<compile_context>
chip_gen: v5e
topology: v5e:2x2
jax: 0.10.0
libtpu: 0.0.40
codegen_flags: <defaults>
</compile_context>

<pallas_src>
import jax
import jax.numpy as jnp
from jax.experimental import pallas as pl
from jax.experimental.pallas import tpu as pltpu


def _attn_kernel(hidden_ref, enc_ref, w1t_ref, w2t_ref, b12_ref, v_ref,
                 ctx_ref, attw_ref):
    tb, s, h = enc_ref.shape
    u = w1t_ref.shape[1]

    enc = enc_ref[...]                                                        # (TB, S, H)

    # W1(hidden) + (b1 + b2): one small (TB, H) @ (H, U) matmul per block.
    s1 = jnp.dot(hidden_ref[...], w1t_ref[...],
                 preferred_element_type=jnp.float32) + b12_ref[...]           # (TB, U)

    # W2(enc): flatten batch*seq so the MXU sees one tall (TB*S, H) LHS.
    s2 = jnp.dot(enc.reshape(tb * s, h), w2t_ref[...],
                 preferred_element_type=jnp.float32).reshape(tb, s, u)        # (TB, S, U)

    t = jnp.tanh(s2 + s1[:, None, :])                                         # (TB, S, U)

    # V projection has output width 1: keep it off the MXU (VPU mul + lane reduce).
    v_row = v_ref[...].astype(jnp.float32)                                    # (1, U)
    e = jnp.sum(t * v_row[None, :, :], axis=-1)                               # (TB, S)

    # Numerically stable softmax over the sequence (lane) axis.
    m = jnp.max(e, axis=-1, keepdims=True)                                    # (TB, 1)
    p = jnp.exp(e - m)                                                        # (TB, S)
    denom = jnp.sum(p, axis=-1, keepdims=True)                                # (TB, 1)
    w = p * pl.reciprocal(denom, approx=True)                                 # (TB, S)

    # context = sum_s w[b, s] * enc[b, s, :]  (VPU multiply + sublane reduce).
    ctx = jnp.sum(w[:, :, None] * enc.astype(jnp.float32), axis=1)            # (TB, H)

    ctx_ref[...] = ctx.astype(ctx_ref.dtype)
    attw_ref[...] = w.astype(attw_ref.dtype)                                  # lane-dense store


def _choose_block_b(B, S, H, itemsize):
    """Batch tile: ~256 flattened MXU rows, sublane-aligned, >=2 grid steps when
    possible, and the double-buffered enc block bounded for v7x's 64 MiB VMEM."""
    target_rows = 256                                    # MXU row fill on v6e/v7x (128 ok on v5e)
    vmem_budget = 8 * 1024 * 1024                        # bytes for 2x enc block
    cap = max(1, min(target_rows // max(S, 1),
                     vmem_budget // max(1, 2 * S * H * itemsize)))
    valid = [d for d in range(1, B + 1)
             if B % d == 0 and (d % 8 == 0 or d == B)]   # sublane (8) alignment
    multi = [d for d in valid if B // d >= 2]            # keep both v7x TCs busy
    if multi:
        under = [d for d in multi if d <= cap]
        return max(under) if under else min(multi)
    return B


def bahdanau_attention(hidden, enc_output, params, *, block_b=None,
                       compute_dtype=jnp.float32):
    """hidden: (B, H), enc_output: (B, S, H).
    Returns (context (B, H) f32, attention_weights (B, S, 1) f32)."""
    W1, b1, W2, b2, V, bV = params
    B, S, H = enc_output.shape
    U = W1.shape[0]
    assert hidden.shape == (B, H)
    # nn.Linear(dec_output_dim, 1) is applied to a `units`-wide tensor => U == H.
    assert U == H, "module requires units == dec_output_dim"
    del bV  # softmax is shift-invariant: V's bias cannot affect either output.

    if block_b is None:
        block_b = _choose_block_b(B, S, H, jnp.dtype(compute_dtype).itemsize)
    assert B % block_b == 0
    tb = block_b
    grid = (B // tb,)

    # Glue: pre-transpose weights, fold biases, choose storage dtype for the
    # HBM-dominant matmul operands (enc_output and W2^T); accumulate in f32.
    w1t = W1.T.astype(jnp.float32)                     # (H, U)
    w2t = W2.T.astype(compute_dtype)                   # (H, U)  full-array block
    b12 = (b1 + b2)[None, :].astype(jnp.float32)       # (1, U)
    v_row = V.astype(jnp.float32)                      # (1, U)
    hidden_f32 = hidden.astype(jnp.float32)
    enc_cast = enc_output.astype(compute_dtype)

    full = lambda a: pl.BlockSpec(a.shape, lambda b: (0,) * a.ndim)

    ctx, attw = pl.pallas_call(
        _attn_kernel,
        out_shape=(
            jax.ShapeDtypeStruct((B, H), jnp.float32),
            jax.ShapeDtypeStruct((B, S), jnp.float32),   # lane-dense weights
        ),
        grid_spec=pltpu.PrefetchScalarGridSpec(
            num_scalar_prefetch=0,
            grid=grid,
            in_specs=[
                pl.BlockSpec((tb, H), lambda b: (b, 0)),        # hidden
                pl.BlockSpec((tb, S, H), lambda b: (b, 0, 0)),  # enc_output
                full(w1t),                                      # W1^T
                full(w2t),                                      # W2^T
                full(b12),                                      # b1 + b2
                full(v_row),                                    # V row
            ],
            out_specs=[
                pl.BlockSpec((tb, H), lambda b: (b, 0)),        # context
                pl.BlockSpec((tb, S), lambda b: (b, 0)),        # attention weights
            ],
        ),
        compiler_params=pltpu.CompilerParams(
            dimension_semantics=("parallel",),
            vmem_limit_bytes=32 * 1024 * 1024,
        ),
    )(hidden_f32, enc_cast, w1t, w2t, b12, v_row)

    return ctx, attw[:, :, None]


def _ref_forward(hidden, enc_output, params):
    W1, b1, W2, b2, V, bV = params
    q = hidden[:, None, :]
    score = jnp.tanh(q @ W1.T + b1 + enc_output @ W2.T + b2) @ V.T + bV   # (B, S, 1)
    w = jax.nn.softmax(score, axis=1)
    ctx = jnp.sum(w * enc_output, axis=1)
    return ctx, w


def _init_params(key, dec_output_dim, units):
    """Deterministic init mirroring nn.Linear shapes (uniform +-1/sqrt(fan_in))."""
    k1, k2, k3, k4, k5, k6 = jax.random.split(key, 6)
    lim = 1.0 / jnp.sqrt(dec_output_dim)
    W1 = jax.random.uniform(k1, (units, dec_output_dim), jnp.float32, -lim, lim)
    b1 = jax.random.uniform(k2, (units,), jnp.float32, -lim, lim)
    W2 = jax.random.uniform(k3, (units, dec_output_dim), jnp.float32, -lim, lim)
    b2 = jax.random.uniform(k4, (units,), jnp.float32, -lim, lim)
    V = jax.random.uniform(k5, (1, dec_output_dim), jnp.float32, -lim, lim)
    bV = jax.random.uniform(k6, (1,), jnp.float32, -lim, lim)
    return W1, b1, W2, b2, V, bV


if __name__ == "__main__":
    B, S, H = 16, 8, 32          # batch, encoder seq len, dec_output_dim (== units)
    U = H                        # module requires units == dec_output_dim

    key = jax.random.PRNGKey(0)
    kp, kh, ke = jax.random.split(key, 3)
    params = _init_params(kp, H, U)
    hidden = jax.random.normal(kh, (B, H), jnp.float32)
    enc_output = jax.random.normal(ke, (B, S, H), jnp.float32)

    ctx_ref, attw_ref = _ref_forward(hidden, enc_output, params)

    # f32 path (tolerance accounts for the EUP approximate reciprocal in softmax).
    ctx, attw = jax.block_until_ready(bahdanau_attention(hidden, enc_output, params))
    assert ctx.shape == (B, H) and attw.shape == (B, S, 1)
    assert jnp.allclose(ctx, ctx_ref, atol=5e-3, rtol=5e-3)
    assert jnp.allclose(attw, attw_ref, atol=5e-3, rtol=5e-3)

    # bf16 storage for the HBM-dominant operands, f32 MXU accumulation.
    ctx_bf, attw_bf = jax.block_until_ready(
        bahdanau_attention(hidden, enc_output, params, compute_dtype=jnp.bfloat16))
    assert jnp.allclose(ctx_bf, ctx_ref, atol=5e-2, rtol=5e-2)
    assert jnp.allclose(attw_bf, attw_ref, atol=5e-2, rtol=5e-2)

    print("KERNEL_OK")
</pallas_src>

<mosaic_0001>
module attributes {stable_mosaic.version = 11 : i64} {
  func.func @_attn_kernel(%arg0: i32, %arg1: memref<8x32xf32, #tpu.memory_space<vmem>>, %arg2: memref<8x8x32xf32, #tpu.memory_space<vmem>>, %arg3: memref<32x32xf32, #tpu.memory_space<vmem>>, %arg4: memref<32x32xf32, #tpu.memory_space<vmem>>, %arg5: memref<1x32xf32, #tpu.memory_space<vmem>>, %arg6: memref<1x32xf32, #tpu.memory_space<vmem>>, %arg7: memref<8x32xf32, #tpu.memory_space<vmem>>, %arg8: memref<8x8xf32, #tpu.memory_space<vmem>>) attributes {dimension_semantics = [#tpu.dimension_semantics<parallel>], iteration_bounds = array<i64: 2>, scalar_prefetch = 0 : i64, scratch_operands = 0 : i64, tpu.core_type = #tpu.core_type<tc>, window_params = [{transform_indices = @transform_0, window_bounds = array<i64: 8, 32>}, {transform_indices = @transform_1, window_bounds = array<i64: 8, 8, 32>}, {pipeline_mode = #tpu.pipeline_mode<synchronous>, transform_indices = @transform_2, window_bounds = array<i64: 32, 32>}, {pipeline_mode = #tpu.pipeline_mode<synchronous>, transform_indices = @transform_3, window_bounds = array<i64: 32, 32>}, {pipeline_mode = #tpu.pipeline_mode<synchronous>, transform_indices = @transform_4, window_bounds = array<i64: 1, 32>}, {pipeline_mode = #tpu.pipeline_mode<synchronous>, transform_indices = @transform_5, window_bounds = array<i64: 1, 32>}, {transform_indices = @transform_6, window_bounds = array<i64: 8, 32>}, {transform_indices = @transform_7, window_bounds = array<i64: 8, 8>}]} {
    %c0 = arith.constant 0 : index
    %c0_0 = arith.constant 0 : index
    %c0_1 = arith.constant 0 : index
    %0 = vector.load %arg2[%c0, %c0_0, %c0_1] : memref<8x8x32xf32, #tpu.memory_space<vmem>>, vector<8x8x32xf32>
    %c0_2 = arith.constant 0 : index
    %c0_3 = arith.constant 0 : index
    %1 = vector.load %arg1[%c0_2, %c0_3] : memref<8x32xf32, #tpu.memory_space<vmem>>, vector<8x32xf32>
    %c0_4 = arith.constant 0 : index
    %c0_5 = arith.constant 0 : index
    %2 = vector.load %arg3[%c0_4, %c0_5] : memref<32x32xf32, #tpu.memory_space<vmem>>, vector<32x32xf32>
    %cst = arith.constant dense<0.000000e+00> : vector<8x32xf32>
    %3 = tpu.matmul %1, %2, %cst {dimension_numbers = #tpu.dot_dimension_numbers<[1], [0], [0], [1], [0, 0, 1, 1], [], []>} : vector<8x32xf32>, vector<32x32xf32>, vector<8x32xf32> -> vector<8x32xf32>
    %c0_6 = arith.constant 0 : index
    %c0_7 = arith.constant 0 : index
    %4 = vector.load %arg5[%c0_6, %c0_7] : memref<1x32xf32, #tpu.memory_space<vmem>>, vector<1x32xf32>
    %5 = vector.broadcast %4 : vector<1x32xf32> to vector<8x32xf32>
    %6 = arith.addf %3, %5 : vector<8x32xf32>
    %7 = vector.shape_cast %0 : vector<8x8x32xf32> to vector<64x32xf32>
    %c0_8 = arith.constant 0 : index
    %c0_9 = arith.constant 0 : index
    %8 = vector.load %arg4[%c0_8, %c0_9] : memref<32x32xf32, #tpu.memory_space<vmem>>, vector<32x32xf32>
    %cst_10 = arith.constant dense<0.000000e+00> : vector<64x32xf32>
    %9 = tpu.matmul %7, %8, %cst_10 {dimension_numbers = #tpu.dot_dimension_numbers<[1], [0], [0], [1], [0, 0, 1, 1], [], []>} : vector<64x32xf32>, vector<32x32xf32>, vector<64x32xf32> -> vector<64x32xf32>
    %10 = vector.shape_cast %9 : vector<64x32xf32> to vector<8x8x32xf32>
    %11 = vector.shape_cast %6 : vector<8x32xf32> to vector<8x1x32xf32>
    %12 = vector.broadcast %11 : vector<8x1x32xf32> to vector<8x8x32xf32>
    %13 = arith.addf %10, %12 : vector<8x8x32xf32>
    %14 = math.tanh %13 : vector<8x8x32xf32>
    %c0_11 = arith.constant 0 : index
    %c0_12 = arith.constant 0 : index
    %15 = vector.load %arg6[%c0_11, %c0_12] : memref<1x32xf32, #tpu.memory_space<vmem>>, vector<1x32xf32>
    %16 = vector.shape_cast %15 : vector<1x32xf32> to vector<1x1x32xf32>
    %17 = vector.broadcast %16 : vector<1x1x32xf32> to vector<8x8x32xf32>
    %18 = arith.mulf %14, %17 : vector<8x8x32xf32>
    %cst_13 = arith.constant dense<0.000000e+00> : vector<8x8xf32>
    %19 = vector.multi_reduction <add>, %18, %cst_13 [2] : vector<8x8x32xf32> to vector<8x8xf32>
    %cst_14 = arith.constant dense<0xFF800000> : vector<8xf32>
    %20 = vector.multi_reduction <maximumf>, %19, %cst_14 [1] : vector<8x8xf32> to vector<8xf32>
    %21 = vector.shape_cast %20 : vector<8xf32> to vector<8x1xf32>
    %22 = vector.broadcast %21 : vector<8x1xf32> to vector<8x8xf32>
    %23 = arith.subf %19, %22 : vector<8x8xf32>
    %24 = math.exp %23 : vector<8x8xf32>
    %cst_15 = arith.constant dense<0.000000e+00> : vector<8xf32>
    %25 = vector.multi_reduction <add>, %24, %cst_15 [1] : vector<8x8xf32> to vector<8xf32>
    %26 = vector.shape_cast %25 : vector<8xf32> to vector<8x1xf32>
    %27 = tpu.reciprocal %26 {approx = true} : vector<8x1xf32> -> vector<8x1xf32>
    %28 = vector.broadcast %27 : vector<8x1xf32> to vector<8x8xf32>
    %29 = arith.mulf %24, %28 : vector<8x8xf32>
    %30 = vector.shape_cast %29 : vector<8x8xf32> to vector<8x8x1xf32>
    %31 = vector.broadcast %30 : vector<8x8x1xf32> to vector<8x8x32xf32>
    %32 = arith.mulf %31, %0 : vector<8x8x32xf32>
    %cst_16 = arith.constant dense<0.000000e+00> : vector<8x32xf32>
    %33 = vector.multi_reduction <add>, %32, %cst_16 [1] : vector<8x8x32xf32> to vector<8x32xf32>
    %c0_17 = arith.constant 0 : index
    %c0_18 = arith.constant 0 : index
    %34 = vector.load %arg7[%c0_17, %c0_18] : memref<8x32xf32, #tpu.memory_space<vmem>>, vector<8x32xf32>
    tpu.vector_store %arg7[%c0_17, %c0_18], %33 {strides = array<i32>} : memref<8x32xf32, #tpu.memory_space<vmem>>, vector<8x32xf32>,
    %c0_19 = arith.constant 0 : index
    %c0_20 = arith.constant 0 : index
    %35 = vector.load %arg8[%c0_19, %c0_20] : memref<8x8xf32, #tpu.memory_space<vmem>>, vector<8x8xf32>
    tpu.vector_store %arg8[%c0_19, %c0_20], %29 {strides = array<i32>} : memref<8x8xf32, #tpu.memory_space<vmem>>, vector<8x8xf32>,
    return
  }
  func.func @transform_0(%arg0: i32) -> (i32, i32) {
    %c0_i32 = arith.constant 0 : i32
    %c0_i32_0 = arith.constant 0 : i32
    return %arg0, %c0_i32 : i32, i32
  }
  func.func @transform_1(%arg0: i32) -> (i32, i32, i32) {
    %c0_i32 = arith.constant 0 : i32
    %c0_i32_0 = arith.constant 0 : i32
    %c0_i32_1 = arith.constant 0 : i32
    return %arg0, %c0_i32, %c0_i32_0 : i32, i32, i32
  }
  func.func @transform_2(%arg0: i32) -> (i32, i32) {
    %c0_i32 = arith.constant 0 : i32
    %c0_i32_0 = arith.constant 0 : i32
    %c0_i32_1 = arith.constant 0 : i32
    return %c0_i32, %c0_i32_0 : i32, i32
  }
  func.func @transform_3(%arg0: i32) -> (i32, i32) {
    %c0_i32 = arith.constant 0 : i32
    %c0_i32_0 = arith.constant 0 : i32
    %c0_i32_1 = arith.constant 0 : i32
    return %c0_i32, %c0_i32_0 : i32, i32
  }
  func.func @transform_4(%arg0: i32) -> (i32, i32) {
    %c0_i32 = arith.constant 0 : i32
    %c0_i32_0 = arith.constant 0 : i32
    %c0_i32_1 = arith.constant 0 : i32
    return %c0_i32, %c0_i32_0 : i32, i32
  }
  func.func @transform_5(%arg0: i32) -> (i32, i32) {
    %c0_i32 = arith.constant 0 : i32
    %c0_i32_0 = arith.constant 0 : i32
    %c0_i32_1 = arith.constant 0 : i32
    return %c0_i32, %c0_i32_0 : i32, i32
  }
  func.func @transform_6(%arg0: i32) -> (i32, i32) {
    %c0_i32 = arith.constant 0 : i32
    %c0_i32_0 = arith.constant 0 : i32
    return %arg0, %c0_i32 : i32, i32
  }
  func.func @transform_7(%arg0: i32) -> (i32, i32) {
    %c0_i32 = arith.constant 0 : i32
    %c0_i32_0 = arith.constant 0 : i32
    return %arg0, %c0_i32 : i32, i32
  }
}

</mosaic_0001>

<llo_original>
// kernel: tpu_custom_call.1
$region0: #{tpu_custom_call.1}
  #allocation0 [shape = 'u32[]', space=smem, size = 0x4, offset = 0x4, fixed_abs, tag = 'smem constant byte address 0x4 - core index']
  #allocation1 [shape = 'u32[72,128]{1,0:T(1,128)}', space=vmem, size = 0x9000, scoped, tag = 'internal scratch']
  %s0 = inlined_call_operand.hbm [shape: f32[16,32], index: 0, kind: input, shape index: {}]
  %s1 = inlined_call_operand.hbm [shape: f32[16,8,32], index: 1, kind: input, shape index: {}]
  %s2 = inlined_call_operand.hbm [shape: f32[32,32], index: 2, kind: input, shape index: {}]
  %s3 = inlined_call_operand.hbm [shape: f32[32,32], index: 3, kind: input, shape index: {}]
  %s4 = inlined_call_operand.vmem [shape: f32[1,32], index: 4, kind: input, shape index: {}]
  %s5 = inlined_call_operand.vmem [shape: f32[1,32], index: 5, kind: input, shape index: {}]
  %s6 = inlined_call_operand.hbm [shape: f32[16,32], index: 6, kind: output, shape index: {0}]
  %s7 = inlined_call_operand.vmem [shape: f32[16,8], index: 7, kind: output, shape index: {1}]
  %8 = xla_tuple %s6, %s7
  %s9 = sld [smem:[#allocation0]]
  $region81: #{tpu_custom_call.1} parent=0
    _
  %s11 = ssub.s32 1, %s9
  %s12 = scalar_select 0, %s11, %s9
  $region1: #{tpu_custom_call.1} parent=0
    #allocation2 [shape = 'u8[8192]{0}', space=vmem, size = 0x2000, scoped, tag = 'input window, operand 0']
    #allocation3 [shape = 's32[2]{0}', space=sflag, size = 0x8, scoped, tag = 'scoped memory for tpu_custom_call.1']
    #allocation4 [shape = 's32[2]{0}', space=sflag, size = 0x8, scoped, tag = 'scoped memory for tpu_custom_call.1']
    #allocation5 [shape = 'u8[65536]{0}', space=vmem, size = 0x10000, scoped, tag = 'input window, operand 1']
    #allocation6 [shape = 's32[2]{0}', space=sflag, size = 0x8, scoped, tag = 'scoped memory for tpu_custom_call.1']
    #allocation7 [shape = 'u8[16384]{0}', space=vmem, size = 0x4000, scoped, tag = 'input window, operand 2, single buffered']
    #allocation8 [shape = 'u8[16384]{0}', space=vmem, size = 0x4000, scoped, tag = 'input window, operand 3, single buffered']
    #allocation9 [shape = 's32[1]{0}', space=sflag, size = 0x4, scoped, tag = 'scoped memory for tpu_custom_call.1']
    #allocation10 [shape = 'u8[8192]{0}', space=vmem, size = 0x2000, scoped, tag = 'output window, operand 0']
    %13 = vsyncpa [#allocation3], 0
    %s14 = scalar_lea.sflag [#allocation3], 1
    %15 = vsyncpa %s14, 0
    %16 = vsyncpa [#allocation6], 0
    %s17 = scalar_lea.sflag [#allocation6], 1
    %18 = vsyncpa %s17, 0
    %19 = vsyncpa [#allocation9], 0
    %20 = vsyncpa [#allocation4], 0
    %s21 = scalar_lea.sflag [#allocation4], 1
    %22 = vsyncpa %s21, 0
    loop: start=0, step=1, limit=4
    $region2: #{tpu_custom_call.1} parent=1 // loop_pre_header
      _
    $region3: #{tpu_custom_call.1} parent=1 // loop_header
      %s24 = sphi 0, %s28
      %p25 = scmp.ge.s32.totalorder %s24, 4
      %s34 = sphi 0, %s36
      %s37 = sphi 0, %s34
      %s38 = sphi 0, %s37
      %s54 = sphi 0, %s38
      %s60 = sphi 0, %s62
      %s63 = sphi 0, %s60
      %s64 = sphi 0, %s63
      %s80 = sphi 0, %s64
      %s84 = sphi 0, %s84
      %s86 = sphi 0, %s84
      %s87 = sphi 0, %s86
      %s101 = sphi 0, %s87
      %s105 = sphi 0, %s105
      %s107 = sphi 0, %s105
      %s108 = sphi 0, %s107
      %s122 = sphi 0, %s108
      %s126 = sphi 0, %s126
      %s128 = sphi 0, %s126
      %s129 = sphi 0, %s128
      %s143 = sphi 0, %s129
      %s147 = sphi 0, %s147
      %s149 = sphi 0, %s147
      %s150 = sphi 0, %s149
      %s164 = sphi 0, %s150
      %s170 = sphi 0, %s172
      %s173 = sphi 0, %s170
      %s174 = sphi 0, %s173
      %s190 = sphi 0, %s174
      %s196 = sphi 0, %s198
      %s199 = sphi 0, %s196
      %s200 = sphi 0, %s199
      %s216 = sphi 0, %s200
    $region4: #{tpu_custom_call.1} parent=1 // loop_header_branch
      %27 = sbr.rel (%p25) target = $region8
    $region5: #{tpu_custom_call.1} parent=1 // loop_body
      %s29 = ssub.s32 %s24, 1
      %s30 = ssub.s32 %s24, 2
      %s31 = sadd.s32 %s24, 1
      %s32 = ssub.s32 %s24, %s31
      %p33 = scmp.eq.s32.totalorder %s32, 0
      %s35 = sadd.s32 %s34, 1
      %s36 = scalar_select %p33, %s34, %s35
      %p39 = pneg %p33
      %p40 = scmp.eq.s32.totalorder %s24, 1
      %p41 = por %p39, %p40
      %p42 = scmp.ne.s32.totalorder %s34, %s37
      %p43 = scmp.eq.s32.totalorder %s24, 0
      %p44 = por %p42, %p43
      %p45 = scmp.ne.s32.totalorder %s34, %s37
      %p46 = scmp.eq.s32.totalorder %s29, 1
      %p47 = por %p45, %p46
      %p48 = scmp.ne.s32.totalorder %s37, %s38
      %p49 = scmp.eq.s32.totalorder %s29, 0
      %p50 = por %p48, %p49
      %p51 = scmp.ne.s32.totalorder %s37, %s38
      %p52 = scmp.eq.s32.totalorder %s30, 1
      %p53 = por %p51, %p52
      %p55 = scmp.ne.s32.totalorder %s38, %s54
      %p56 = scmp.eq.s32.totalorder %s30, 0
      %p57 = por %p55, %p56
      %s58 = ssub.s32 %s24, %s31
      %p59 = scmp.eq.s32.totalorder %s58, 0
      %s61 = sadd.s32 %s60, 1
      %s62 = scalar_select %p59, %s60, %s61
      %p65 = pneg %p59
      %p66 = scmp.eq.s32.totalorder %s24, 1
      %p67 = por %p65, %p66
      %p68 = scmp.ne.s32.totalorder %s60, %s63
      %p69 = scmp.eq.s32.totalorder %s24, 0
      %p70 = por %p68, %p69
      %p71 = scmp.ne.s32.totalorder %s60, %s63
      %p72 = scmp.eq.s32.totalorder %s29, 1
      %p73 = por %p71, %p72
      %p74 = scmp.ne.s32.totalorder %s63, %s64
      %p75 = scmp.eq.s32.totalorder %s29, 0
      %p76 = por %p74, %p75
      %p77 = scmp.ne.s32.totalorder %s63, %s64
      %p78 = scmp.eq.s32.totalorder %s30, 1
      %p79 = por %p77, %p78
      %p81 = scmp.ne.s32.totalorder %s64, %s80
      %p82 = scmp.eq.s32.totalorder %s30, 0
      %p83 = por %p81, %p82
      %s85 = sadd.s32 %s84, 1
      %p88 = scmp.eq.s32.totalorder %s24, 1
      %p89 = scmp.ne.s32.totalorder %s84, %s86
      %p90 = scmp.eq.s32.totalorder %s24, 0
      %p91 = por %p89, %p90
      %p92 = scmp.ne.s32.totalorder %s84, %s86
      %p93 = scmp.eq.s32.totalorder %s29, 1
      %p94 = por %p92, %p93
      %p95 = scmp.ne.s32.totalorder %s86, %s87
      %p96 = scmp.eq.s32.totalorder %s29, 0
      %p97 = por %p95, %p96
      %p98 = scmp.ne.s32.totalorder %s86, %s87
      %p99 = scmp.eq.s32.totalorder %s30, 1
      %p100 = por %p98, %p99
      %p102 = scmp.ne.s32.totalorder %s87, %s101
      %p103 = scmp.eq.s32.totalorder %s30, 0
      %p104 = por %p102, %p103
      %s106 = sadd.s32 %s105, 1
      %p109 = scmp.eq.s32.totalorder %s24, 1
      %p110 = scmp.ne.s32.totalorder %s105, %s107
      %p111 = scmp.eq.s32.totalorder %s24, 0
      %p112 = por %p110, %p111
      %p113 = scmp.ne.s32.totalorder %s105, %s107
      %p114 = scmp.eq.s32.totalorder %s29, 1
      %p115 = por %p113, %p114
      %p116 = scmp.ne.s32.totalorder %s107, %s108
      %p117 = scmp.eq.s32.totalorder %s29, 0
      %p118 = por %p116, %p117
      %p119 = scmp.ne.s32.totalorder %s107, %s108
      %p120 = scmp.eq.s32.totalorder %s30, 1
      %p121 = por %p119, %p120
      %p123 = scmp.ne.s32.totalorder %s108, %s122
      %p124 = scmp.eq.s32.totalorder %s30, 0
      %p125 = por %p123, %p124
      %s127 = sadd.s32 %s126, 1
      %p130 = scmp.eq.s32.totalorder %s24, 1
      %p131 = scmp.ne.s32.totalorder %s126, %s128
      %p132 = scmp.eq.s32.totalorder %s24, 0
      %p133 = por %p131, %p132
      %p134 = scmp.ne.s32.totalorder %s126, %s128
      %p135 = scmp.eq.s32.totalorder %s29, 1
      %p136 = por %p134, %p135
      %p137 = scmp.ne.s32.totalorder %s128, %s129
      %p138 = scmp.eq.s32.totalorder %s29, 0
      %p139 = por %p137, %p138
      %p140 = scmp.ne.s32.totalorder %s128, %s129
      %p141 = scmp.eq.s32.totalorder %s30, 1
      %p142 = por %p140, %p141
      %p144 = scmp.ne.s32.totalorder %s129, %s143
      %p145 = scmp.eq.s32.totalorder %s30, 0
      %p146 = por %p144, %p145
      %s148 = sadd.s32 %s147, 1
      %p151 = scmp.eq.s32.totalorder %s24, 1
      %p152 = scmp.ne.s32.totalorder %s147, %s149
      %p153 = scmp.eq.s32.totalorder %s24, 0
      %p154 = por %p152, %p153
      %p155 = scmp.ne.s32.totalorder %s147, %s149
      %p156 = scmp.eq.s32.totalorder %s29, 1
      %p157 = por %p155, %p156
      %p158 = scmp.ne.s32.totalorder %s149, %s150
      %p159 = scmp.eq.s32.totalorder %s29, 0
      %p160 = por %p158, %p159
      %p161 = scmp.ne.s32.totalorder %s149, %s150
      %p162 = scmp.eq.s32.totalorder %s30, 1
      %p163 = por %p161, %p162
      %p165 = scmp.ne.s32.totalorder %s150, %s164
      %p166 = scmp.eq.s32.totalorder %s30, 0
      %p167 = por %p165, %p166
      %s168 = ssub.s32 %s24, %s31
      %p169 = scmp.eq.s32.totalorder %s168, 0
      %s171 = sadd.s32 %s170, 1
      %s172 = scalar_select %p169, %s170, %s171
      %p175 = pneg %p169
      %p176 = scmp.eq.s32.totalorder %s24, 1
      %p177 = por %p175, %p176
      %p178 = scmp.ne.s32.totalorder %s170, %s173
      %p179 = scmp.eq.s32.totalorder %s24, 0
      %p180 = por %p178, %p179
      %p181 = scmp.ne.s32.totalorder %s170, %s173
      %p182 = scmp.eq.s32.totalorder %s29, 1
      %p183 = por %p181, %p182
      %p184 = scmp.ne.s32.totalorder %s173, %s174
      %p185 = scmp.eq.s32.totalorder %s29, 0
      %p186 = por %p184, %p185
      %p187 = scmp.ne.s32.totalorder %s173, %s174
      %p188 = scmp.eq.s32.totalorder %s30, 1
      %p189 = por %p187, %p188
      %p191 = scmp.ne.s32.totalorder %s174, %s190
      %p192 = scmp.eq.s32.totalorder %s30, 0
      %p193 = por %p191, %p192
      %s194 = ssub.s32 %s24, %s31
      %p195 = scmp.eq.s32.totalorder %s194, 0
      %s197 = sadd.s32 %s196, 1
      %s198 = scalar_select %p195, %s196, %s197
      %p201 = pneg %p195
      %p202 = scmp.eq.s32.totalorder %s24, 1
      %p203 = por %p201, %p202
      %p204 = scmp.ne.s32.totalorder %s196, %s199
      %p205 = scmp.eq.s32.totalorder %s24, 0
      %p206 = por %p204, %p205
      %p207 = scmp.ne.s32.totalorder %s196, %s199
      %p208 = scmp.eq.s32.totalorder %s29, 1
      %p209 = por %p207, %p208
      %p210 = scmp.ne.s32.totalorder %s199, %s200
      %p211 = scmp.eq.s32.totalorder %s29, 0
      %p212 = por %p210, %p211
      %p213 = scmp.ne.s32.totalorder %s199, %s200
      %p214 = scmp.eq.s32.totalorder %s30, 1
      %p215 = por %p213, %p214
      %p217 = scmp.ne.s32.totalorder %s200, %s216
      %p218 = scmp.eq.s32.totalorder %s30, 0
      %p219 = por %p217, %p218
      %p220 = scmp.le.s32.totalorder 1, %s24
      %p221 = scmp.lt.s32.totalorder %s24, 3
      %p222 = pnand %p220, %p221
      %p223 = pneg %p222
      // Predicated region
      $region9: #{tpu_custom_call.1} parent=5 // pred_check
        _
      $region10: #{tpu_custom_call.1} parent=5 // pred_check_branch
        %225 = sbr.rel (%p222) target = $region12
      $region11: #{tpu_custom_call.1} parent=5 // pred_region
        %s226 = ssub.s32 %s24, 1
        // Predicated region
        $region13: #{tpu_custom_call.1} parent=11 // pred_check
          %p227 = pneg %p97
        $region14: #{tpu_custom_call.1} parent=11 // pred_check_branch
          %229 = sbr.rel (%p227) target = $region16
        $region15: #{tpu_custom_call.1} parent=11 // pred_region
          %231 = vsyncadd [#allocation6], 0
          %s232 = sshll.u32 %s2, 4
          %s233 = int_to_ptr.hbm [resolvable:$true] %s232
          %s234 = sshll.u32 [#allocation7], 4
          %s235 = int_to_ptr.vmem [resolvable:$true] %s234
          %240 = dma.hbm_to_vmem [thread:$0]  %s233, 512, %s235, [#allocation6], 128, 128, 8
        $region16: #{tpu_custom_call.1} parent=11 // pred_fallthru
          _
        // Predicated region
        $region17: #{tpu_custom_call.1} parent=11 // pred_check
          %p241 = pneg %p118
        $region18: #{tpu_custom_call.1} parent=11 // pred_check_branch
          %243 = sbr.rel (%p241) target = $region20
        $region19: #{tpu_custom_call.1} parent=11 // pred_region
          %245 = vsyncadd [#allocation9], 0
          %s246 = sshll.u32 %s3, 4
          %s247 = int_to_ptr.hbm [resolvable:$true] %s246
          %s248 = sshll.u32 [#allocation8], 4
          %s249 = int_to_ptr.vmem [resolvable:$true] %s248
          %254 = dma.hbm_to_vmem [thread:$0]  %s247, 512, %s249, [#allocation9], 128, 128, 8
        $region20: #{tpu_custom_call.1} parent=11 // pred_fallthru
          _
        // Predicated region
        $region21: #{tpu_custom_call.1} parent=11 // pred_check
          %p255 = pneg %p139
        $region22: #{tpu_custom_call.1} parent=11 // pred_check_branch
          %257 = sbr.rel (%p255) target = $region24
        $region23: #{tpu_custom_call.1} parent=11 // pred_region
          _
        $region24: #{tpu_custom_call.1} parent=11 // pred_fallthru
          _
        // Predicated region
        $region25: #{tpu_custom_call.1} parent=11 // pred_check
          %p258 = pneg %p160
        $region26: #{tpu_custom_call.1} parent=11 // pred_check_branch
          %260 = sbr.rel (%p258) target = $region28
        $region27: #{tpu_custom_call.1} parent=11 // pred_region
          _
        $region28: #{tpu_custom_call.1} parent=11 // pred_fallthru
          _
      $region12: #{tpu_custom_call.1} parent=5 // pred_fallthru
        _
      %p261 = scmp.lt.s32.totalorder %s24, 2
      // Predicated region
      $region29: #{tpu_custom_call.1} parent=5 // pred_check
        %p262 = pneg %p261
      $region30: #{tpu_custom_call.1} parent=5 // pred_check_branch
        %264 = sbr.rel (%p262) target = $region32
      $region31: #{tpu_custom_call.1} parent=5 // pred_region
        // Predicated region
        $region33: #{tpu_custom_call.1} parent=31 // pred_check
          %p265 = pneg %p44
        $region34: #{tpu_custom_call.1} parent=31 // pred_check_branch
          %267 = sbr.rel (%p265) target = $region36
        $region35: #{tpu_custom_call.1} parent=31 // pred_region
          %s268 = sand.u32 %s34, 1
          %s269 = scalar_lea.sflag [#allocation3], %s268
          %s270 = sand.u32 %s34, 1
          %s271 = smul.addr %s270, 8
          %s272 = scalar_lea.vmem [#allocation2], %s271
          %274 = vsyncadd %s269, 0
          %s275 = smul.addr %s24, 8
          %s276 = scalar_lea.hbm %s0, %s275
          %s278 = sshll.u32 %s276, 4
          %s279 = int_to_ptr.hbm [resolvable:$true] %s278
          %s280 = sshll.u32 %s272, 4
          %s281 = int_to_ptr.vmem [resolvable:$true] %s280
          %283 = dma.hbm_to_vmem [thread:$0]  %s279, 128, %s281, %s269
        $region36: #{tpu_custom_call.1} parent=31 // pred_fallthru
          _
        // Predicated region
        $region37: #{tpu_custom_call.1} parent=31 // pred_check
          %p284 = pneg %p70
        $region38: #{tpu_custom_call.1} parent=31 // pred_check_branch
          %286 = sbr.rel (%p284) target = $region40
        $region39: #{tpu_custom_call.1} parent=31 // pred_region
          %s287 = sand.u32 %s24, 1
          %s288 = scalar_lea.sflag [#allocation6], %s287
          %s289 = sand.u32 %s60, 1
          %s290 = smul.addr %s289, 64
          %s291 = scalar_lea.vmem [#allocation5], %s290
          %s292 = smul.u32 8, %s24
          %294 = vsyncadd %s288, 0
          %s295 = smul.addr %s292, 8
          %s296 = scalar_lea.hbm %s1, %s295
          %s297 = sshll.u32 %s296, 4
          %s298 = int_to_ptr.hbm [resolvable:$true] %s297
          %s299 = sshll.u32 %s291, 4
          %s300 = int_to_ptr.vmem [resolvable:$true] %s299
          %305 = dma.hbm_to_vmem [thread:$0]  %s298, 1024, %s300, %s288, 128, 128, 8
        $region40: #{tpu_custom_call.1} parent=31 // pred_fallthru
          _
      $region32: #{tpu_custom_call.1} parent=5 // pred_fallthru
        _
      %p306 = scmp.le.s32.totalorder 1, %s24
      %p307 = scmp.lt.s32.totalorder %s24, 3
      %p308 = pnand %p306, %p307
      %p309 = pneg %p308
      // Predicated region
      $region41: #{tpu_custom_call.1} parent=5 // pred_check
        _
      $region42: #{tpu_custom_call.1} parent=5 // pred_check_branch
        %311 = sbr.rel (%p308) target = $region44
      $region43: #{tpu_custom_call.1} parent=5 // pred_region
        %s312 = ssub.s32 %s24, 1
        %s313 = sand.u32 %s37, 1
        %s314 = scalar_lea.sflag [#allocation3], %s313
        %s315 = sand.u32 %s37, 1
        %s316 = smul.addr %s315, 8
        %s317 = scalar_lea.vmem [#allocation2], %s316
        // Predicated region
        $region45: #{tpu_custom_call.1} parent=43 // pred_check
          %p318 = pneg %p50
        $region46: #{tpu_custom_call.1} parent=43 // pred_check_branch
          %320 = sbr.rel (%p318) target = $region48
        $region47: #{tpu_custom_call.1} parent=43 // pred_region
          %322 = dma.done %s314, 128
        $region48: #{tpu_custom_call.1} parent=43 // pred_fallthru
          _
        %s323 = sand.u32 %s29, 1
        %s324 = scalar_lea.sflag [#allocation6], %s323
        %s325 = sand.u32 %s63, 1
        %s326 = smul.addr %s325, 64
        %s327 = scalar_lea.vmem [#allocation5], %s326
        // Predicated region
        $region49: #{tpu_custom_call.1} parent=43 // pred_check
          %p328 = pneg %p76
        $region50: #{tpu_custom_call.1} parent=43 // pred_check_branch
          %330 = sbr.rel (%p328) target = $region52
        $region51: #{tpu_custom_call.1} parent=43 // pred_region
          %332 = dma.done %s324, 1024
        $region52: #{tpu_custom_call.1} parent=43 // pred_fallthru
          _
        // Predicated region
        $region53: #{tpu_custom_call.1} parent=43 // pred_check
          %p333 = pneg %p97
        $region54: #{tpu_custom_call.1} parent=43 // pred_check_branch
          %335 = sbr.rel (%p333) target = $region56
        $region55: #{tpu_custom_call.1} parent=43 // pred_region
          %337 = dma.done [#allocation6], 512
        $region56: #{tpu_custom_call.1} parent=43 // pred_fallthru
          _
        // Predicated region
        $region57: #{tpu_custom_call.1} parent=43 // pred_check
          %p338 = pneg %p118
        $region58: #{tpu_custom_call.1} parent=43 // pred_check_branch
          %340 = sbr.rel (%p338) target = $region60
        $region59: #{tpu_custom_call.1} parent=43 // pred_region
          %342 = dma.done [#allocation9], 512
        $region60: #{tpu_custom_call.1} parent=43 // pred_fallthru
          _
        %s343 = sand.u32 %s37, 1
        %s344 = scalar_lea.sflag [#allocation3], %s343
        %s345 = sand.u32 %s37, 1
        %s346 = smul.addr %s345, 8
        %s347 = scalar_lea.vmem [#allocation2], %s346
        %p348 = pneg %p50
        %p349 = pneg %p47
        %s350 = sand.u32 %s29, 1
        %s351 = scalar_lea.sflag [#allocation6], %s350
        %s352 = sand.u32 %s63, 1
        %s353 = smul.addr %s352, 64
        %s354 = scalar_lea.vmem [#allocation5], %s353
        %p355 = pneg %p76
        %p356 = pneg %p73
        %p357 = pneg %p97
        %p358 = pneg %p94
        %p359 = pneg %p118
        %p360 = pneg %p115
        %p361 = pneg %p139
        %p362 = pneg %p136
        %p363 = pneg %p160
        %p364 = pneg %p157
        %p365 = pneg %p186
        %p366 = pneg %p183
        %s367 = sand.u32 %s173, 1
        %s368 = scalar_lea.sflag [#allocation4], %s367
        %s369 = sand.u32 %s173, 1
        %s370 = smul.addr %s369, 8
        %s371 = scalar_lea.vmem [#allocation10], %s370
        %p372 = pneg %p212
        %p373 = pneg %p209
        %p374 = scmp.lt.s32.totalorder %s29, 1
        %s375 = scalar_select %p374, %s29, 1
        %s376 = smul.addr %s375, 8
        %s377 = scalar_lea.vmem %s7, %s376
        %s378 = smul.u32 8, %s29
        %p379 = scmp.lt.s32.totalorder %s29, 1
        %s380 = scalar_select %p379, %s29, 1
        %s381 = smul.addr %s380, 8
        %s382 = scalar_lea.vmem %s7, %s381
        %v383 = vld [vmem:[%s327] sm:$0xff]
        %v384 = vld [vmem:[%s327 + $0x8] sm:$0xff]
        %v385 = vld [vmem:[%s327 + $0x10] sm:$0xff]
        %v386 = vld [vmem:[%s327 + $0x18] sm:$0xff]
        %v387 = vld [vmem:[%s327 + $0x20] sm:$0xff]
        %v388 = vld [vmem:[%s327 + $0x28] sm:$0xff]
        %v389 = vld [vmem:[%s327 + $0x30] sm:$0xff]
        %v390 = vld [vmem:[%s327 + $0x38] sm:$0xff]
        %v391 = vld [vmem:[%s317] sm:$0xff]
        %v392 = vld [vmem:[#allocation7] sm:$0xff]
        %v393 = vld [vmem:[#allocation7 + $0x8] sm:$0xff]
        %v394 = vld [vmem:[#allocation7 + $0x10] sm:$0xff]
        %v395 = vld [vmem:[#allocation7 + $0x18] sm:$0xff]
        %v396 = vld [vmem:[%s4] sm:$0x1]
        %v398 = vperm.slane %v396, 0
        %vm400 = vcmask 261120
        %v402 = vsel %vm400, %v391, 0
        %404 = vmatpush.msra.mxu0 0.0
        %405 = vmatpush.msra.mxu0 0.0
        %406 = vmatpush.msra.mxu0 0.0
        %407 = vmatpush.msra.mxu0 0.0
        %408 = vmatpush.msra.mxu0 0.0
        %409 = vmatpush.msra.mxu0 0.0
        %410 = vmatpush.msra.mxu0 0.0
        %411 = vmatpush.msra.mxu0 0.0
        %412 = vmatpush.msra.mxu0 0.0
        %413 = vmatpush.msra.mxu0 0.0
        %414 = vmatpush.msra.mxu0 0.0
        %415 = vmatpush.msra.mxu0 0.0
        %416 = vmatpush.msra.mxu0 %v395
        %417 = vmatpush.msra.mxu0 %v394
        %418 = vmatpush.msra.mxu0 %v393
        %419 = vmatpush.msra.mxu0 %v392
        %420 = vmatmul.f32.gmra.mxu0 %v402
        %v421 = vpop.f32.mrf.mxu0
        %v422 = vadd.f32 %v398, %v421
        %423 = vdwg.mxu0
        %v424 = vld [vmem:[#allocation8] sm:$0xff]
        %v425 = vld [vmem:[#allocation8 + $0x8] sm:$0xff]
        %v426 = vld [vmem:[#allocation8 + $0x10] sm:$0xff]
        %v427 = vld [vmem:[#allocation8 + $0x18] sm:$0xff]
        %v429 = vsel %vm400, %v383, 0
        %v432 = vsel %vm400, %v384, 0
        %v435 = vsel %vm400, %v385, 0
        %v438 = vsel %vm400, %v386, 0
        %v441 = vsel %vm400, %v387, 0
        %v444 = vsel %vm400, %v388, 0
        %v447 = vsel %vm400, %v389, 0
        %v450 = vsel %vm400, %v390, 0
        %452 = vmatpush.msra.mxu0 0.0
        %453 = vmatpush.msra.mxu0 0.0
        %454 = vmatpush.msra.mxu0 0.0
        %455 = vmatpush.msra.mxu0 0.0
        %456 = vmatpush.msra.mxu0 0.0
        %457 = vmatpush.msra.mxu0 0.0
        %458 = vmatpush.msra.mxu0 0.0
        %459 = vmatpush.msra.mxu0 0.0
        %460 = vmatpush.msra.mxu0 0.0
        %461 = vmatpush.msra.mxu0 0.0
        %462 = vmatpush.msra.mxu0 0.0
        %463 = vmatpush.msra.mxu0 0.0
        %464 = vmatpush.msra.mxu0 %v427
        %465 = vmatpush.msra.mxu0 %v426
        %466 = vmatpush.msra.mxu0 %v425
        %467 = vmatpush.msra.mxu0 %v424
        %468 = vmatmul.f32.gmra.mxu0 %v429
        %v469 = vpop.f32.mrf.mxu0
        %v470 = vadd.f32 0.0, %v469
        %471 = vmatmul.f32.gmra.mxu0 %v432
        %v472 = vpop.f32.mrf.mxu0
        %v473 = vadd.f32 0.0, %v472
        %474 = vmatmul.f32.gmra.mxu0 %v435
        %v475 = vpop.f32.mrf.mxu0
        %v476 = vadd.f32 0.0, %v475
        %477 = vmatmul.f32.gmra.mxu0 %v438
        %v478 = vpop.f32.mrf.mxu0
        %v479 = vadd.f32 0.0, %v478
        %480 = vmatmul.f32.gmra.mxu0 %v441
        %v481 = vpop.f32.mrf.mxu0
        %v482 = vadd.f32 0.0, %v481
        %483 = vmatmul.f32.gmra.mxu0 %v444
        %v484 = vpop.f32.mrf.mxu0
        %v485 = vadd.f32 0.0, %v484
        %486 = vmatmul.f32.gmra.mxu0 %v447
        %v487 = vpop.f32.mrf.mxu0
        %v488 = vadd.f32 0.0, %v487
        %489 = vmatmul.f32.gmra.mxu0 %v450
        %v490 = vpop.f32.mrf.mxu0
        %v491 = vadd.f32 0.0, %v490
        %492 = vdwg.mxu0
        %v494 = vrot.slane %v422, 1
        %v495 = vrot.slane %v422, 2
        %v496 = vrot.slane %v422, 3
        %v497 = vrot.slane %v422, 4
        %v498 = vrot.slane %v422, 5
        %v499 = vrot.slane %v422, 6
        %v500 = vrot.slane %v422, 7
        %v501 = vperm.slane %v422, 0
        %v502 = vperm.slane %v494, 0
        %v503 = vperm.slane %v495, 0
        %v504 = vperm.slane %v496, 0
        %v505 = vperm.slane %v497, 0
        %v506 = vperm.slane %v498, 0
        %v507 = vperm.slane %v499, 0
        %v508 = vperm.slane %v500, 0
        %v517 = vadd.f32 %v470, %v501
        %v518 = vadd.f32 %v473, %v502
        %v519 = vadd.f32 %v476, %v503
        %v520 = vadd.f32 %v479, %v504
        %v521 = vadd.f32 %v482, %v505
        %v522 = vadd.f32 %v485, %v506
        %v523 = vadd.f32 %v488, %v507
        %v524 = vadd.f32 %v491, %v508
        %v525 = vtanh.pop %v517
        %v526 = vtanh.pop %v518
        %v527 = vtanh.pop %v519
        %v528 = vtanh.pop %v520
        %v529 = vtanh.pop %v521
        %v530 = vtanh.pop %v522
        %v531 = vtanh.pop %v523
        %v532 = vtanh.pop %v524
        %v533 = vld [vmem:[%s5] sm:$0x1]
        %v535 = vperm.slane %v533, 0
        %v537 = vmul.f32 %v525, %v535
        %v538 = vmul.f32 %v526, %v535
        %v539 = vmul.f32 %v527, %v535
        %v540 = vmul.f32 %v528, %v535
        %v541 = vmul.f32 %v529, %v535
        %v542 = vmul.f32 %v530, %v535
        %v543 = vmul.f32 %v531, %v535
        %v544 = vmul.f32 %v532, %v535
        %v545 = vsel %vm400, %v537, 0.0
        %546 = vadd.xlane.f32.xlu0 %v545
        %v547 = vpop.xlane.xlu0 %546
        %v548 = vsel %vm400, %v538, 0.0
        %549 = vadd.xlane.f32.xlu0 %v548
        %v550 = vpop.xlane.xlu0 %549
        %v551 = vsel %vm400, %v539, 0.0
        %552 = vadd.xlane.f32.xlu0 %v551
        %v553 = vpop.xlane.xlu0 %552
        %v554 = vsel %vm400, %v540, 0.0
        %555 = vadd.xlane.f32.xlu0 %v554
        %v556 = vpop.xlane.xlu0 %555
        %v557 = vsel %vm400, %v541, 0.0
        %558 = vadd.xlane.f32.xlu0 %v557
        %v559 = vpop.xlane.xlu0 %558
        %v560 = vsel %vm400, %v542, 0.0
        %561 = vadd.xlane.f32.xlu0 %v560
        %v562 = vpop.xlane.xlu0 %561
        %v563 = vsel %vm400, %v543, 0.0
        %564 = vadd.xlane.f32.xlu0 %v563
        %v565 = vpop.xlane.xlu0 %564
        %v566 = vsel %vm400, %v544, 0.0
        %567 = vadd.xlane.f32.xlu0 %v566
        %v568 = vpop.xlane.xlu0 %567
        %v577 = vlaneseq
        %v578 = vand.u32 %v577, 127
        %v579 = vperm.slane %v547, %v578
        %v580 = vperm.slane %v550, %v578
        %v581 = vperm.slane %v553, %v578
        %v582 = vperm.slane %v556, %v578
        %v583 = vperm.slane %v559, %v578
        %v584 = vperm.slane %v562, %v578
        %v585 = vperm.slane %v565, %v578
        %v586 = vperm.slane %v568, %v578
        %vm587 = vcmask 1041409
        %v588 = vsel %vm587, %v580, %v579
        %vm589 = vcmask 1042434
        %v590 = vsel %vm589, %v581, %v588
        %vm591 = vcmask 1043459
        %v592 = vsel %vm591, %v582, %v590
        %vm593 = vcmask 1044484
        %v594 = vsel %vm593, %v583, %v592
        %vm595 = vcmask 1045509
        %v596 = vsel %vm595, %v584, %v594
        %vm597 = vcmask 1046534
        %v598 = vsel %vm597, %v585, %v596
        %vm599 = vcmask 1047559
        %v600 = vsel %vm599, %v586, %v598
        %vm602 = vcmask 64512
        %v603 = vsel %vm602, %v600, -inf
        %604 = vmax.xlane.f32.xlu0 %v603
        %v605 = vpop.xlane.xlu0 %604
        %v607 = vperm.slane %v605, 0
        %v608 = vperm.slane %v605, 1
        %v609 = vperm.slane %v605, 2
        %v610 = vperm.slane %v605, 3
        %v611 = vperm.slane %v605, 4
        %v612 = vperm.slane %v605, 5
        %v613 = vperm.slane %v605, 6
        %v614 = vperm.slane %v605, 7
        %v623 = vsub.f32 %v547, %v607
        %v624 = vsub.f32 %v550, %v608
        %v625 = vsub.f32 %v553, %v609
        %v626 = vsub.f32 %v556, %v610
        %v627 = vsub.f32 %v559, %v611
        %v628 = vsub.f32 %v562, %v612
        %v629 = vsub.f32 %v565, %v613
        %v630 = vsub.f32 %v568, %v614
        %v631 = vmul.f32 %v623, 1.442695
        %v632 = vpow.pop %v631
        %v633 = vmul.f32 %v624, 1.442695
        %v634 = vpow.pop %v633
        %v635 = vmul.f32 %v625, 1.442695
        %v636 = vpow.pop %v635
        %v637 = vmul.f32 %v626, 1.442695
        %v638 = vpow.pop %v637
        %v639 = vmul.f32 %v627, 1.442695
        %v640 = vpow.pop %v639
        %v641 = vmul.f32 %v628, 1.442695
        %v642 = vpow.pop %v641
        %v643 = vmul.f32 %v629, 1.442695
        %v644 = vpow.pop %v643
        %v645 = vmul.f32 %v630, 1.442695
        %v646 = vpow.pop %v645
        %655 = vset.pattern.permute.xlu0 0
        %656 = vperm.xlu0 %655, %v632
        %v657 = vpop.permute.xlu0 %656
        %658 = vset.pattern.permute.xlu0 0
        %659 = vperm.xlu0 %658, %v634
        %v660 = vpop.permute.xlu0 %659
        %661 = vset.pattern.permute.xlu0 0
        %662 = vperm.xlu0 %661, %v636
        %v663 = vpop.permute.xlu0 %662
        %664 = vset.pattern.permute.xlu0 0
        %665 = vperm.xlu0 %664, %v638
        %v666 = vpop.permute.xlu0 %665
        %667 = vset.pattern.permute.xlu0 0
        %668 = vperm.xlu0 %667, %v640
        %v669 = vpop.permute.xlu0 %668
        %670 = vset.pattern.permute.xlu0 0
        %671 = vperm.xlu0 %670, %v642
        %v672 = vpop.permute.xlu0 %671
        %673 = vset.pattern.permute.xlu0 0
        %674 = vperm.xlu0 %673, %v644
        %v675 = vpop.permute.xlu0 %674
        %676 = vset.pattern.permute.xlu0 0
        %677 = vperm.xlu0 %676, %v646
        %v678 = vpop.permute.xlu0 %677
        %v679 = vperm.slane %v657, %v578
        %v680 = vperm.slane %v660, %v578
        %v681 = vperm.slane %v663, %v578
        %v682 = vperm.slane %v666, %v578
        %v683 = vperm.slane %v669, %v578
        %v684 = vperm.slane %v672, %v578
        %v685 = vperm.slane %v675, %v578
        %v686 = vperm.slane %v678, %v578
        %v687 = vsel %vm587, %v680, %v679
        %v688 = vsel %vm589, %v681, %v687
        %v689 = vsel %vm591, %v682, %v688
        %v690 = vsel %vm593, %v683, %v689
        %v691 = vsel %vm595, %v684, %v690
        %v692 = vsel %vm597, %v685, %v691
        %v693 = vsel %vm599, %v686, %v692
        %v695 = vsel %vm602, %v693, 0.0
        %696 = vadd.xlane.f32.xlu0 %v695
        %v697 = vpop.xlane.xlu0 %696
        %v698 = vrcp.pop %v697
        %v700 = vperm.slane %v698, 0
        %v701 = vperm.slane %v698, 1
        %v702 = vperm.slane %v698, 2
        %v703 = vperm.slane %v698, 3
        %v704 = vperm.slane %v698, 4
        %v705 = vperm.slane %v698, 5
        %v706 = vperm.slane %v698, 6
        %v707 = vperm.slane %v698, 7
        %v716 = vmul.f32 %v632, %v700
        %v717 = vmul.f32 %v634, %v701
        %v718 = vmul.f32 %v636, %v702
        %v719 = vmul.f32 %v638, %v703
        %v720 = vmul.f32 %v640, %v704
        %v721 = vmul.f32 %v642, %v705
        %v722 = vmul.f32 %v644, %v706
        %v723 = vmul.f32 %v646, %v707
        %725 = vset.pattern.permute.xlu0 0
        %726 = vperm.xlu0 %725, %v716
        %v727 = vpop.permute.xlu0 %726
        %730 = vset.pattern.permute.xlu0 0
        %731 = vperm.xlu0 %730, %v717
        %v732 = vpop.permute.xlu0 %731
        %735 = vset.pattern.permute.xlu0 0
        %736 = vperm.xlu0 %735, %v718
        %v737 = vpop.permute.xlu0 %736
        %740 = vset.pattern.permute.xlu0 0
        %741 = vperm.xlu0 %740, %v719
        %v742 = vpop.permute.xlu0 %741
        %745 = vset.pattern.permute.xlu0 0
        %746 = vperm.xlu0 %745, %v720
        %v747 = vpop.permute.xlu0 %746
        %750 = vset.pattern.permute.xlu0 0
        %751 = vperm.xlu0 %750, %v721
        %v752 = vpop.permute.xlu0 %751
        %755 = vset.pattern.permute.xlu0 0
        %756 = vperm.xlu0 %755, %v722
        %v757 = vpop.permute.xlu0 %756
        %760 = vset.pattern.permute.xlu0 0
        %761 = vperm.xlu0 %760, %v723
        %v762 = vpop.permute.xlu0 %761
        %v764 = vmul.f32 %v727, %v383
        %v765 = vmul.f32 %v732, %v384
        %v766 = vmul.f32 %v737, %v385
        %v767 = vmul.f32 %v742, %v386
        %v768 = vmul.f32 %v747, %v387
        %v769 = vmul.f32 %v752, %v388
        %v770 = vmul.f32 %v757, %v389
        %v771 = vmul.f32 %v762, %v390
        %v772 = vsel %vm400, %v764, 0.0
        %v773 = vrot.slane %v772, 4
        %v774 = vadd.f32 %v772, %v773
        %v775 = vrot.slane %v774, 2
        %v776 = vadd.f32 %v774, %v775
        %v777 = vrot.slane %v776, 1
        %v778 = vadd.f32 %v776, %v777
        %v779 = vsel %vm400, %v765, 0.0
        %v780 = vrot.slane %v779, 4
        %v781 = vadd.f32 %v779, %v780
        %v782 = vrot.slane %v781, 2
        %v783 = vadd.f32 %v781, %v782
        %v784 = vrot.slane %v783, 1
        %v785 = vadd.f32 %v783, %v784
        %v786 = vsel %vm400, %v766, 0.0
        %v787 = vrot.slane %v786, 4
        %v788 = vadd.f32 %v786, %v787
        %v789 = vrot.slane %v788, 2
        %v790 = vadd.f32 %v788, %v789
        %v791 = vrot.slane %v790, 1
        %v792 = vadd.f32 %v790, %v791
        %v793 = vsel %vm400, %v767, 0.0
        %v794 = vrot.slane %v793, 4
        %v795 = vadd.f32 %v793, %v794
        %v796 = vrot.slane %v795, 2
        %v797 = vadd.f32 %v795, %v796
        %v798 = vrot.slane %v797, 1
        %v799 = vadd.f32 %v797, %v798
        %v800 = vsel %vm400, %v768, 0.0
        %v801 = vrot.slane %v800, 4
        %v802 = vadd.f32 %v800, %v801
        %v803 = vrot.slane %v802, 2
        %v804 = vadd.f32 %v802, %v803
        %v805 = vrot.slane %v804, 1
        %v806 = vadd.f32 %v804, %v805
        %v807 = vsel %vm400, %v769, 0.0
        %v808 = vrot.slane %v807, 4
        %v809 = vadd.f32 %v807, %v808
        %v810 = vrot.slane %v809, 2
        %v811 = vadd.f32 %v809, %v810
        %v812 = vrot.slane %v811, 1
        %v813 = vadd.f32 %v811, %v812
        %v814 = vsel %vm400, %v770, 0.0
        %v815 = vrot.slane %v814, 4
        %v816 = vadd.f32 %v814, %v815
        %v817 = vrot.slane %v816, 2
        %v818 = vadd.f32 %v816, %v817
        %v819 = vrot.slane %v818, 1
        %v820 = vadd.f32 %v818, %v819
        %v821 = vsel %vm400, %v771, 0.0
        %v822 = vrot.slane %v821, 4
        %v823 = vadd.f32 %v821, %v822
        %v824 = vrot.slane %v823, 2
        %v825 = vadd.f32 %v823, %v824
        %v826 = vrot.slane %v825, 1
        %v827 = vadd.f32 %v825, %v826
        %v836 = vsel %vm587, %v785, %v778
        %v837 = vsel %vm589, %v792, %v836
        %v838 = vsel %vm591, %v799, %v837
        %v839 = vsel %vm593, %v806, %v838
        %v840 = vsel %vm595, %v813, %v839
        %v841 = vsel %vm597, %v820, %v840
        %v842 = vsel %vm599, %v827, %v841
        %844 = vst.msk [vmem:[%s371] sm:$0xff] %vm400, %v842
        %v845 = vperm.slane %v727, %v578
        %v846 = vperm.slane %v732, %v578
        %v847 = vperm.slane %v737, %v578
        %v848 = vperm.slane %v742, %v578
        %v849 = vperm.slane %v747, %v578
        %v850 = vperm.slane %v752, %v578
        %v851 = vperm.slane %v757, %v578
        %v852 = vperm.slane %v762, %v578
        %v853 = vsel %vm587, %v846, %v845
        %v854 = vsel %vm589, %v847, %v853
        %v855 = vsel %vm591, %v848, %v854
        %v856 = vsel %vm593, %v849, %v855
        %v857 = vsel %vm595, %v850, %v856
        %v858 = vsel %vm597, %v851, %v857
        %v859 = vsel %vm599, %v852, %v858
        %861 = vst.msk [vmem:[%s382] sm:$0xff] %vm602, %v859
        %s862 = sand.u32 %s173, 1
        %s863 = scalar_lea.sflag [#allocation4], %s862
        %s864 = sand.u32 %s173, 1
        %s865 = smul.addr %s864, 8
        %s866 = scalar_lea.vmem [#allocation10], %s865
        %p867 = scmp.lt.s32.totalorder %s29, 1
        %s868 = scalar_select %p867, %s29, 1
        %s869 = smul.addr %s868, 8
        %s870 = scalar_lea.vmem %s7, %s869
        // Predicated region
        $region61: #{tpu_custom_call.1} parent=43 // pred_check
          %p871 = pneg %p183
        $region62: #{tpu_custom_call.1} parent=43 // pred_check_branch
          %873 = sbr.rel (%p871) target = $region64
        $region63: #{tpu_custom_call.1} parent=43 // pred_region
          %875 = vsyncadd %s863, 0
          %s876 = smul.addr %s29, 8
          %s877 = scalar_lea.hbm %s6, %s876
          %s879 = sshll.u32 %s866, 4
          %s880 = int_to_ptr.vmem [resolvable:$true] %s879
          %s881 = sshll.u32 %s877, 4
          %s882 = int_to_ptr.hbm [resolvable:$true] %s881
          %884 = dma.vmem_to_hbm [thread:$0]  %s880, 128, %s882, %s863
        $region64: #{tpu_custom_call.1} parent=43 // pred_fallthru
          _
        // Predicated region
        $region65: #{tpu_custom_call.1} parent=43 // pred_check
          %p885 = pneg %p209
        $region66: #{tpu_custom_call.1} parent=43 // pred_check_branch
          %887 = sbr.rel (%p885) target = $region68
        $region67: #{tpu_custom_call.1} parent=43 // pred_region
          _
        $region68: #{tpu_custom_call.1} parent=43 // pred_fallthru
          _
      $region44: #{tpu_custom_call.1} parent=5 // pred_fallthru
        _
      %p888 = scmp.le.s32.totalorder 2, %s24
      // Predicated region
      $region69: #{tpu_custom_call.1} parent=5 // pred_check
        %p889 = pneg %p888
      $region70: #{tpu_custom_call.1} parent=5 // pred_check_branch
        %891 = sbr.rel (%p889) target = $region72
      $region71: #{tpu_custom_call.1} parent=5 // pred_region
        %s892 = ssub.s32 %s24, 2
        // Predicated region
        $region73: #{tpu_custom_call.1} parent=71 // pred_check
          %p893 = pneg %p189
        $region74: #{tpu_custom_call.1} parent=71 // pred_check_branch
          %895 = sbr.rel (%p893) target = $region76
        $region75: #{tpu_custom_call.1} parent=71 // pred_region
          %s896 = sand.u32 %s174, 1
          %s897 = scalar_lea.sflag [#allocation4], %s896
          %s898 = sand.u32 %s174, 1
          %s899 = smul.addr %s898, 8
          %s900 = scalar_lea.vmem [#allocation10], %s899
          %902 = dma.done %s897, 128
        $region76: #{tpu_custom_call.1} parent=71 // pred_fallthru
          _
        // Predicated region
        $region77: #{tpu_custom_call.1} parent=71 // pred_check
          %p903 = pneg %p215
        $region78: #{tpu_custom_call.1} parent=71 // pred_check_branch
          %905 = sbr.rel (%p903) target = $region80
        $region79: #{tpu_custom_call.1} parent=71 // pred_region
          %p906 = scmp.lt.s32.totalorder %s30, 1
          %s907 = scalar_select %p906, %s30, 1
          %s908 = smul.addr %s907, 8
          %s909 = scalar_lea.vmem %s7, %s908
        $region80: #{tpu_custom_call.1} parent=71 // pred_fallthru
          _
      $region72: #{tpu_custom_call.1} parent=5 // pred_fallthru
        _
    $region6: #{tpu_custom_call.1} parent=1 // loop_footer
      %s28 = sadd.s32 1, %s24
    $region7: #{tpu_custom_call.1} parent=1 // loop_footer_branch
      %23 = sbr.rel target = $region3
    $region8: #{tpu_custom_call.1} parent=1 // loop_exit
      _
    %910 = vsyncpa [#allocation3], 1
    %s911 = scalar_lea.sflag [#allocation3], 1
    %912 = vsyncpa %s911, 1
    %913 = vsyncpa [#allocation6], 1
    %s914 = scalar_lea.sflag [#allocation6], 1
    %915 = vsyncpa %s914, 1
    %916 = vsyncpa [#allocation9], 1
    %917 = vsyncpa [#allocation4], 1
    %s918 = scalar_lea.sflag [#allocation4], 1
    %919 = vsyncpa %s918, 1

</llo_original>
